<compile_context>
chip_gen: v7x
topology: tpu7x:2x2x1
jax: 0.10.0
libtpu: 0.0.40
codegen_flags: <defaults>
</compile_context>

<pallas_src>
import functools

import jax
import jax.numpy as jnp
from jax.experimental import pallas as pl
from jax.experimental.pallas import tpu as pltpu


def _round_up(x, m):
    return ((x + m - 1) // m) * m


def _pick_hidden_tile(H, target):
    """Largest multiple of 128, <= target, that divides round_up(H, 128)."""
    Hp = _round_up(H, 128)
    t = max(128, min(target, Hp))
    t -= t % 128
    while t > 128:
        if Hp % t == 0:
            return t, Hp
        t -= 128
    return 128, Hp


def ffn_kernel(x_ref, w1_ref, b1_ref, w2_ref, b2_ref, o_ref, acc_ref):
    # x_ref:  (tm, Dp)  bf16 row tile            (resident across h axis)
    # w1_ref: (Dp, th)  bf16 W1 slice,  b1_ref: (1, th) f32
    # w2_ref: (th, Dp)  bf16 W2 slice,  b2_ref: (1, Dp) f32
    # o_ref:  (tm, Dp)  output tile              (resident across h axis)
    # acc_ref:(tm, Dp)  f32 accumulator scratch
    h_idx = pl.program_id(1)

    @pl.when(h_idx == 0)
    def _():
        acc_ref[...] = jnp.zeros_like(acc_ref)

    # First matmul on this hidden slice; bias + ReLU in f32.
    h = jnp.dot(x_ref[...], w1_ref[...], preferred_element_type=jnp.float32)
    h = jnp.maximum(h + b1_ref[...], 0.0)

    # Partial second matmul, accumulated in f32 across the hidden axis.
    acc_ref[...] += jnp.dot(h.astype(w2_ref.dtype), w2_ref[...],
                            preferred_element_type=jnp.float32)

    @pl.when(h_idx == pl.num_programs(1) - 1)
    def _():
        o_ref[...] = (acc_ref[...] + b2_ref[...]).astype(o_ref.dtype)


@functools.partial(jax.jit, static_argnames=("tm", "th", "compute_dtype"))
def feed_forward(x, w1, b1, w2, b2, *, tm=512, th=512,
                 compute_dtype=jnp.bfloat16):
    """x: (B, T, D). w1: (D, H), b1: (1, H), w2: (H, D), b2: (1, D)."""
    B, T, D = x.shape
    H = w1.shape[1]
    M = B * T

    # ---- tile sizes & zero padding to lane/sublane friendly multiples ------
    tm_eff = max(8, min(tm, _round_up(M, 8)))          # multiple of 8
    th_eff, Hp = _pick_hidden_tile(H, th)              # multiple of 128, divides Hp
    Mp = _round_up(M, tm_eff)
    Dp = _round_up(D, 128)

    x2 = jnp.pad(x.reshape(M, D), ((0, Mp - M), (0, Dp - D)))
    w1p = jnp.pad(w1, ((0, Dp - D), (0, Hp - H)))
    b1p = jnp.pad(b1, ((0, 0), (0, Hp - H)))
    w2p = jnp.pad(w2, ((0, Hp - H), (0, Dp - D)))
    b2p = jnp.pad(b2, ((0, 0), (0, Dp - D)))

    x2 = x2.astype(compute_dtype)
    w1p = w1p.astype(compute_dtype)
    w2p = w2p.astype(compute_dtype)
    b1p = b1p.astype(jnp.float32)
    b2p = b2p.astype(jnp.float32)

    grid = (Mp // tm_eff, Hp // th_eff)

    # ---- explicit VMEM budget (double-buffered blocks + f32 scratch) -------
    citem = jnp.dtype(compute_dtype).itemsize
    oitem = jnp.dtype(x.dtype).itemsize
    vmem_bytes = 2 * (tm_eff * Dp * citem          # x tile
                      + Dp * th_eff * citem        # W1 slice
                      + th_eff * Dp * citem        # W2 slice
                      + th_eff * 4 + Dp * 4        # bias slices
                      + tm_eff * Dp * oitem)       # output tile
    vmem_bytes += tm_eff * Dp * 4                  # accumulator scratch
    vmem_bytes = int(vmem_bytes * 1.5) + (2 << 20)
    vmem_bytes = min(max(vmem_bytes, 32 << 20), 64 << 20)  # fits v7x physical

    cost = pl.CostEstimate(
        flops=4 * Mp * Dp * Hp,
        transcendentals=0,
        bytes_accessed=(Mp * Dp * citem                              # read x
                        + (Mp // tm_eff) * 2 * Dp * Hp * citem       # weights
                        + Hp * 4 + Dp * 4                            # biases
                        + Mp * Dp * oitem))                          # write out

    out = pl.pallas_call(
        ffn_kernel,
        out_shape=jax.ShapeDtypeStruct((Mp, Dp), x.dtype),
        grid_spec=pltpu.PrefetchScalarGridSpec(
            num_scalar_prefetch=0,
            grid=grid,
            in_specs=[
                pl.BlockSpec((tm_eff, Dp), lambda i, h: (i, 0)),   # x rows
                pl.BlockSpec((Dp, th_eff), lambda i, h: (0, h)),   # W1 slice
                pl.BlockSpec((1, th_eff), lambda i, h: (0, h)),    # b1 slice
                pl.BlockSpec((th_eff, Dp), lambda i, h: (h, 0)),   # W2 slice
                pl.BlockSpec((1, Dp), lambda i, h: (0, 0)),        # b2
            ],
            out_specs=pl.BlockSpec((tm_eff, Dp), lambda i, h: (i, 0)),
            scratch_shapes=[pltpu.VMEM((tm_eff, Dp), jnp.float32)],
        ),
        compiler_params=pltpu.CompilerParams(
            dimension_semantics=("parallel", "arbitrary"),
            vmem_limit_bytes=vmem_bytes),
        cost_estimate=cost,
    )(x2, w1p, b1p, w2p, b2p)

    return out[:M, :D].reshape(B, T, D)


def init_params(key, n_embd):
    """PyTorch-style uniform(-1/sqrt(fan_in), 1/sqrt(fan_in)) init, (in, out) layout."""
    hidden = 4 * n_embd
    k1, k2, k3, k4 = jax.random.split(key, 4)
    s1 = 1.0 / jnp.sqrt(n_embd)
    s2 = 1.0 / jnp.sqrt(hidden)
    w1 = jax.random.uniform(k1, (n_embd, hidden), jnp.float32, -s1, s1)
    b1 = jax.random.uniform(k2, (1, hidden), jnp.float32, -s1, s1)
    w2 = jax.random.uniform(k3, (hidden, n_embd), jnp.float32, -s2, s2)
    b2 = jax.random.uniform(k4, (1, n_embd), jnp.float32, -s2, s2)
    return w1, b1, w2, b2


if __name__ == "__main__":
    # Small shapes consistent with the module: (batch, seq, n_embd).
    # n_embd scaled down 1140 -> 140 (intentionally ragged to exercise padding).
    B, T, D = 2, 8, 140
    key = jax.random.PRNGKey(0)
    kx, kp = jax.random.split(key)
    x = jax.random.normal(kx, (B, T, D), jnp.float32)
    w1, b1, w2, b2 = init_params(kp, D)

    y = feed_forward(x, w1, b1, w2, b2)
    jax.block_until_ready(y)

    # Reference with the same bf16 matmul inputs / f32 accumulation (dropout
    # is identity in eval mode).
    xr = x.reshape(-1, D).astype(jnp.bfloat16)
    h_ref = jnp.maximum(
        jnp.dot(xr, w1.astype(jnp.bfloat16),
                preferred_element_type=jnp.float32) + b1, 0.0)
    y_ref = (jnp.dot(h_ref.astype(jnp.bfloat16), w2.astype(jnp.bfloat16),
                     preferred_element_type=jnp.float32) + b2).reshape(B, T, D)

    assert jnp.allclose(y, y_ref, atol=1e-2, rtol=1e-2), "mismatch vs reference"

    print("KERNEL_OK")
</pallas_src>

<mosaic_0001>
module attributes {stable_mosaic.version = 11 : i64} {
  func.func @ffn_kernel(%arg0: i32, %arg1: i32, %arg2: memref<16x256xbf16, #tpu.memory_space<vmem>>, %arg3: memref<256x128xbf16, #tpu.memory_space<vmem>>, %arg4: memref<1x128xf32, #tpu.memory_space<vmem>>, %arg5: memref<128x256xbf16, #tpu.memory_space<vmem>>, %arg6: memref<1x256xf32, #tpu.memory_space<vmem>>, %arg7: memref<16x256xf32, #tpu.memory_space<vmem>>, %arg8: memref<16x256xf32, #tpu.memory_space<vmem>>) attributes {dimension_semantics = [#tpu.dimension_semantics<parallel>, #tpu.dimension_semantics<arbitrary>], iteration_bounds = array<i64: 1, 5>, scalar_prefetch = 0 : i64, scratch_operands = 1 : i64, tpu.core_type = #tpu.core_type<tc>, window_params = [{transform_indices = @transform_0, window_bounds = array<i64: 16, 256>}, {transform_indices = @transform_1, window_bounds = array<i64: 256, 128>}, {transform_indices = @transform_2, window_bounds = array<i64: 1, 128>}, {transform_indices = @transform_3, window_bounds = array<i64: 128, 256>}, {pipeline_mode = #tpu.pipeline_mode<synchronous>, transform_indices = @transform_4, window_bounds = array<i64: 1, 256>}, {transform_indices = @transform_5, window_bounds = array<i64: 16, 256>}]} {
    %c0_i32 = arith.constant 0 : i32
    %0 = arith.cmpi eq, %arg1, %c0_i32 : i32
    %1 = arith.extui %0 : i1 to i32
    %c0_i32_0 = arith.constant 0 : i32
    %2 = arith.cmpi ne, %1, %c0_i32_0 : i32
    scf.if %2 {
      %cst_15 = arith.constant 0.000000e+00 : f32
      %20 = vector.broadcast %cst_15 : f32 to vector<16x256xf32>
      %c0_16 = arith.constant 0 : index
      %c0_17 = arith.constant 0 : index
      %21 = vector.load %arg8[%c0_16, %c0_17] : memref<16x256xf32, #tpu.memory_space<vmem>>, vector<16x256xf32>
      tpu.vector_store %arg8[%c0_16, %c0_17], %20 {strides = array<i32>} : memref<16x256xf32, #tpu.memory_space<vmem>>, vector<16x256xf32>,
    } else {
    }
    %c0 = arith.constant 0 : index
    %c0_1 = arith.constant 0 : index
    %3 = vector.load %arg2[%c0, %c0_1] : memref<16x256xbf16, #tpu.memory_space<vmem>>, vector<16x256xbf16>
    %c0_2 = arith.constant 0 : index
    %c0_3 = arith.constant 0 : index
    %4 = vector.load %arg3[%c0_2, %c0_3] : memref<256x128xbf16, #tpu.memory_space<vmem>>, vector<256x128xbf16>
    %cst = arith.constant dense<0.000000e+00> : vector<16x128xf32>
    %5 = tpu.matmul %3, %4, %cst {dimension_numbers = #tpu.dot_dimension_numbers<[1], [0], [0], [1], [0, 0, 1, 1], [], []>} : vector<16x256xbf16>, vector<256x128xbf16>, vector<16x128xf32> -> vector<16x128xf32>
    %c0_4 = arith.constant 0 : index
    %c0_5 = arith.constant 0 : index
    %6 = vector.load %arg4[%c0_4, %c0_5] : memref<1x128xf32, #tpu.memory_space<vmem>>, vector<1x128xf32>
    %7 = vector.broadcast %6 : vector<1x128xf32> to vector<16x128xf32>
    %8 = arith.addf %5, %7 : vector<16x128xf32>
    %cst_6 = arith.constant 0.000000e+00 : f32
    %9 = vector.broadcast %cst_6 : f32 to vector<16x128xf32>
    %10 = arith.maximumf %8, %9 : vector<16x128xf32>
    %c0_7 = arith.constant 0 : index
    %c0_8 = arith.constant 0 : index
    %11 = vector.load %arg8[%c0_7, %c0_8] : memref<16x256xf32, #tpu.memory_space<vmem>>, vector<16x256xf32>
    %12 = arith.truncf %10 : vector<16x128xf32> to vector<16x128xbf16>
    %c0_9 = arith.constant 0 : index
    %c0_10 = arith.constant 0 : index
    %13 = vector.load %arg5[%c0_9, %c0_10] : memref<128x256xbf16, #tpu.memory_space<vmem>>, vector<128x256xbf16>
    %cst_11 = arith.constant dense<0.000000e+00> : vector<16x256xf32>
    %14 = tpu.matmul %12, %13, %cst_11 {dimension_numbers = #tpu.dot_dimension_numbers<[1], [0], [0], [1], [0, 0, 1, 1], [], []>} : vector<16x128xbf16>, vector<128x256xbf16>, vector<16x256xf32> -> vector<16x256xf32>
    %15 = arith.addf %11, %14 : vector<16x256xf32>
    %c0_12 = arith.constant 0 : index
    %c0_13 = arith.constant 0 : index
    %16 = vector.load %arg8[%c0_12, %c0_13] : memref<16x256xf32, #tpu.memory_space<vmem>>, vector<16x256xf32>
    tpu.vector_store %arg8[%c0_12, %c0_13], %15 {strides = array<i32>} : memref<16x256xf32, #tpu.memory_space<vmem>>, vector<16x256xf32>,
    %c4_i32 = arith.constant 4 : i32
    %17 = arith.cmpi eq, %arg1, %c4_i32 : i32
    %18 = arith.extui %17 : i1 to i32
    %c0_i32_14 = arith.constant 0 : i32
    %19 = arith.cmpi ne, %18, %c0_i32_14 : i32
    scf.if %19 {
      %c0_15 = arith.constant 0 : index
      %c0_16 = arith.constant 0 : index
      %20 = vector.load %arg8[%c0_15, %c0_16] : memref<16x256xf32, #tpu.memory_space<vmem>>, vector<16x256xf32>
      %c0_17 = arith.constant 0 : index
      %c0_18 = arith.constant 0 : index
      %21 = vector.load %arg6[%c0_17, %c0_18] : memref<1x256xf32, #tpu.memory_space<vmem>>, vector<1x256xf32>
      %22 = vector.broadcast %21 : vector<1x256xf32> to vector<16x256xf32>
      %23 = arith.addf %20, %22 : vector<16x256xf32>
      %c0_19 = arith.constant 0 : index
      %c0_20 = arith.constant 0 : index
      %24 = vector.load %arg7[%c0_19, %c0_20] : memref<16x256xf32, #tpu.memory_space<vmem>>, vector<16x256xf32>
      tpu.vector_store %arg7[%c0_19, %c0_20], %23 {strides = array<i32>} : memref<16x256xf32, #tpu.memory_space<vmem>>, vector<16x256xf32>,
    } else {
    }
    return
  }
  func.func @transform_0(%arg0: i32, %arg1: i32) -> (i32, i32) {
    %c0_i32 = arith.constant 0 : i32
    %c0_i32_0 = arith.constant 0 : i32
    return %arg0, %c0_i32 : i32, i32
  }
  func.func @transform_1(%arg0: i32, %arg1: i32) -> (i32, i32) {
    %c0_i32 = arith.constant 0 : i32
    %c0_i32_0 = arith.constant 0 : i32
    return %c0_i32, %arg1 : i32, i32
  }
  func.func @transform_2(%arg0: i32, %arg1: i32) -> (i32, i32) {
    %c0_i32 = arith.constant 0 : i32
    %c0_i32_0 = arith.constant 0 : i32
    return %c0_i32, %arg1 : i32, i32
  }
  func.func @transform_3(%arg0: i32, %arg1: i32) -> (i32, i32) {
    %c0_i32 = arith.constant 0 : i32
    %c0_i32_0 = arith.constant 0 : i32
    return %arg1, %c0_i32 : i32, i32
  }
  func.func @transform_4(%arg0: i32, %arg1: i32) -> (i32, i32) {
    %c0_i32 = arith.constant 0 : i32
    %c0_i32_0 = arith.constant 0 : i32
    %c0_i32_1 = arith.constant 0 : i32
    return %c0_i32, %c0_i32_0 : i32, i32
  }
  func.func @transform_5(%arg0: i32, %arg1: i32) -> (i32, i32) {
    %c0_i32 = arith.constant 0 : i32
    %c0_i32_0 = arith.constant 0 : i32
    return %arg0, %c0_i32 : i32, i32
  }
}

</mosaic_0001>

<llo_original>
// kernel: feed_forward.1
$region0: #{feed_forward.1}
  #allocation0 [shape = 'u32[]', space=smem, size = 0x4, offset = 0x4, fixed_abs, tag = 'smem constant byte address 0x4 - core index']
  #allocation1 [shape = 'u32[144,128]{1,0:T(1,128)}', space=vmem, size = 0x12000, scoped, tag = 'internal scratch']
  #allocation2 [shape = 'f32[16,256]{1,0:T(8,128)}', space=vmem, size = 0x4000, scoped, tag = 'scratch operand']
  %s0 = inlined_call_operand.vmem [shape: bf16[16,256], index: 0, kind: input, shape index: {}]
  %s1 = inlined_call_operand.vmem [shape: bf16[256,640], index: 1, kind: input, shape index: {}]
  %s2 = inlined_call_operand.vmem [shape: f32[1,640], index: 2, kind: input, shape index: {}]
  %s3 = inlined_call_operand.vmem [shape: bf16[640,256], index: 3, kind: input, shape index: {}]
  %s4 = inlined_call_operand.vmem [shape: f32[1,256], index: 4, kind: input, shape index: {}]
  %s5 = inlined_call_operand.vmem [shape: f32[16,256], index: 5, kind: output, shape index: {}]
  %s6 = sld [smem:[#allocation0]]
  $region102: #{feed_forward.1} parent=0
    _
  %s8 = ssub.s32 1, %s6
  %s9 = scalar_select 0, %s8, %s6
  $region1: #{feed_forward.1} parent=0
    #allocation3 [shape = 'u8[131072]{0}', space=vmem, size = 0x20000, scoped, tag = 'input window, operand 1']
    loop: start=0, step=1, limit=7
    $region2: #{feed_forward.1} parent=1 // loop_pre_header
      _
    $region3: #{feed_forward.1} parent=1 // loop_header
      %s11 = sphi 0, %s15
      %p12 = scmp.ge.s32.totalorder %s11, 7
      %s18 = sphi 0, %s30
      %s19 = sphi 0, %s26
      %s20 = sphi 0, %s18
      %s21 = sphi 0, %s19
      %s22 = sphi 0, %s20
      %s23 = sphi 0, %s21
      %s33 = sphi 0, %s35
      %s36 = sphi 0, %s33
      %s37 = sphi 0, %s36
      %s53 = sphi 0, %s37
      %s59 = sphi 0, %s61
      %s62 = sphi 0, %s59
      %s63 = sphi 0, %s62
      %s79 = sphi 0, %s63
      %s85 = sphi 0, %s87
      %s88 = sphi 0, %s85
      %s89 = sphi 0, %s88
      %s105 = sphi 0, %s89
      %s111 = sphi 0, %s113
      %s114 = sphi 0, %s111
      %s115 = sphi 0, %s114
      %s131 = sphi 0, %s115
      %s135 = sphi 0, %s135
      %s137 = sphi 0, %s135
      %s138 = sphi 0, %s137
      %s152 = sphi 0, %s138
      %s158 = sphi 0, %s160
      %s161 = sphi 0, %s158
      %s162 = sphi 0, %s161
      %s178 = sphi 0, %s162
    $region4: #{feed_forward.1} parent=1 // loop_header_branch
      %14 = sbr.rel (%p12) target = $region8
    $region5: #{feed_forward.1} parent=1 // loop_body
      %s16 = ssub.s32 %s11, 1
      %s17 = ssub.s32 %s11, 2
      %s24 = sadd.s32 1, %s19
      %p25 = scmp.ge.s32.totalorder %s24, 5
      %s26 = scalar_select %p25, 0, %s24
      %s27 = sadd.s32 1, %s18
      %s28 = scalar_select %p25, %s27, %s18
      %p29 = scmp.ge.s32.totalorder %s28, 1
      %s30 = scalar_select %p29, 0, %s28
      %s31 = ssub.s32 %s18, %s30
      %p32 = scmp.eq.s32.totalorder %s31, 0
      %s34 = sadd.s32 %s33, 1
      %s35 = scalar_select %p32, %s33, %s34
      %p38 = pneg %p32
      %p39 = scmp.eq.s32.totalorder %s11, 4
      %p40 = por %p38, %p39
      %p41 = scmp.ne.s32.totalorder %s33, %s36
      %p42 = scmp.eq.s32.totalorder %s11, 0
      %p43 = por %p41, %p42
      %p44 = scmp.ne.s32.totalorder %s33, %s36
      %p45 = scmp.eq.s32.totalorder %s16, 4
      %p46 = por %p44, %p45
      %p47 = scmp.ne.s32.totalorder %s36, %s37
      %p48 = scmp.eq.s32.totalorder %s16, 0
      %p49 = por %p47, %p48
      %p50 = scmp.ne.s32.totalorder %s36, %s37
      %p51 = scmp.eq.s32.totalorder %s17, 4
      %p52 = por %p50, %p51
      %p54 = scmp.ne.s32.totalorder %s37, %s53
      %p55 = scmp.eq.s32.totalorder %s17, 0
      %p56 = por %p54, %p55
      %s57 = ssub.s32 %s19, %s26
      %p58 = scmp.eq.s32.totalorder %s57, 0
      %s60 = sadd.s32 %s59, 1
      %s61 = scalar_select %p58, %s59, %s60
      %p64 = pneg %p58
      %p65 = scmp.eq.s32.totalorder %s11, 4
      %p66 = por %p64, %p65
      %p67 = scmp.ne.s32.totalorder %s59, %s62
      %p68 = scmp.eq.s32.totalorder %s11, 0
      %p69 = por %p67, %p68
      %p70 = scmp.ne.s32.totalorder %s59, %s62
      %p71 = scmp.eq.s32.totalorder %s16, 4
      %p72 = por %p70, %p71
      %p73 = scmp.ne.s32.totalorder %s62, %s63
      %p74 = scmp.eq.s32.totalorder %s16, 0
      %p75 = por %p73, %p74
      %p76 = scmp.ne.s32.totalorder %s62, %s63
      %p77 = scmp.eq.s32.totalorder %s17, 4
      %p78 = por %p76, %p77
      %p80 = scmp.ne.s32.totalorder %s63, %s79
      %p81 = scmp.eq.s32.totalorder %s17, 0
      %p82 = por %p80, %p81
      %s83 = ssub.s32 %s19, %s26
      %p84 = scmp.eq.s32.totalorder %s83, 0
      %s86 = sadd.s32 %s85, 1
      %s87 = scalar_select %p84, %s85, %s86
      %p90 = pneg %p84
      %p91 = scmp.eq.s32.totalorder %s11, 4
      %p92 = por %p90, %p91
      %p93 = scmp.ne.s32.totalorder %s85, %s88
      %p94 = scmp.eq.s32.totalorder %s11, 0
      %p95 = por %p93, %p94
      %p96 = scmp.ne.s32.totalorder %s85, %s88
      %p97 = scmp.eq.s32.totalorder %s16, 4
      %p98 = por %p96, %p97
      %p99 = scmp.ne.s32.totalorder %s88, %s89
      %p100 = scmp.eq.s32.totalorder %s16, 0
      %p101 = por %p99, %p100
      %p102 = scmp.ne.s32.totalorder %s88, %s89
      %p103 = scmp.eq.s32.totalorder %s17, 4
      %p104 = por %p102, %p103
      %p106 = scmp.ne.s32.totalorder %s89, %s105
      %p107 = scmp.eq.s32.totalorder %s17, 0
      %p108 = por %p106, %p107
      %s109 = ssub.s32 %s19, %s26
      %p110 = scmp.eq.s32.totalorder %s109, 0
      %s112 = sadd.s32 %s111, 1
      %s113 = scalar_select %p110, %s111, %s112
      %p116 = pneg %p110
      %p117 = scmp.eq.s32.totalorder %s11, 4
      %p118 = por %p116, %p117
      %p119 = scmp.ne.s32.totalorder %s111, %s114
      %p120 = scmp.eq.s32.totalorder %s11, 0
      %p121 = por %p119, %p120
      %p122 = scmp.ne.s32.totalorder %s111, %s114
      %p123 = scmp.eq.s32.totalorder %s16, 4
      %p124 = por %p122, %p123
      %p125 = scmp.ne.s32.totalorder %s114, %s115
      %p126 = scmp.eq.s32.totalorder %s16, 0
      %p127 = por %p125, %p126
      %p128 = scmp.ne.s32.totalorder %s114, %s115
      %p129 = scmp.eq.s32.totalorder %s17, 4
      %p130 = por %p128, %p129
      %p132 = scmp.ne.s32.totalorder %s115, %s131
      %p133 = scmp.eq.s32.totalorder %s17, 0
      %p134 = por %p132, %p133
      %s136 = sadd.s32 %s135, 1
      %p139 = scmp.eq.s32.totalorder %s11, 4
      %p140 = scmp.ne.s32.totalorder %s135, %s137
      %p141 = scmp.eq.s32.totalorder %s11, 0
      %p142 = por %p140, %p141
      %p143 = scmp.ne.s32.totalorder %s135, %s137
      %p144 = scmp.eq.s32.totalorder %s16, 4
      %p145 = por %p143, %p144
      %p146 = scmp.ne.s32.totalorder %s137, %s138
      %p147 = scmp.eq.s32.totalorder %s16, 0
      %p148 = por %p146, %p147
      %p149 = scmp.ne.s32.totalorder %s137, %s138
      %p150 = scmp.eq.s32.totalorder %s17, 4
      %p151 = por %p149, %p150
      %p153 = scmp.ne.s32.totalorder %s138, %s152
      %p154 = scmp.eq.s32.totalorder %s17, 0
      %p155 = por %p153, %p154
      %s156 = ssub.s32 %s18, %s30
      %p157 = scmp.eq.s32.totalorder %s156, 0
      %s159 = sadd.s32 %s158, 1
      %s160 = scalar_select %p157, %s158, %s159
      %p163 = pneg %p157
      %p164 = scmp.eq.s32.totalorder %s11, 4
      %p165 = por %p163, %p164
      %p166 = scmp.ne.s32.totalorder %s158, %s161
      %p167 = scmp.eq.s32.totalorder %s11, 0
      %p168 = por %p166, %p167
      %p169 = scmp.ne.s32.totalorder %s158, %s161
      %p170 = scmp.eq.s32.totalorder %s16, 4
      %p171 = por %p169, %p170
      %p172 = scmp.ne.s32.totalorder %s161, %s162
      %p173 = scmp.eq.s32.totalorder %s16, 0
      %p174 = por %p172, %p173
      %p175 = scmp.ne.s32.totalorder %s161, %s162
      %p176 = scmp.eq.s32.totalorder %s17, 4
      %p177 = por %p175, %p176
      %p179 = scmp.ne.s32.totalorder %s162, %s178
      %p180 = scmp.eq.s32.totalorder %s17, 0
      %p181 = por %p179, %p180
      %p182 = scmp.le.s32.totalorder 1, %s11
      %p183 = scmp.lt.s32.totalorder %s11, 6
      %p184 = pnand %p182, %p183
      %p185 = pneg %p184
      // Predicated region
      $region9: #{feed_forward.1} parent=5 // pred_check
        _
      $region10: #{feed_forward.1} parent=5 // pred_check_branch
        %187 = sbr.rel (%p184) target = $region12
      $region11: #{feed_forward.1} parent=5 // pred_region
        %s188 = ssub.s32 %s11, 1
        // Predicated region
        $region13: #{feed_forward.1} parent=11 // pred_check
          %p189 = pneg %p49
        $region14: #{feed_forward.1} parent=11 // pred_check_branch
          %191 = sbr.rel (%p189) target = $region16
        $region15: #{feed_forward.1} parent=11 // pred_region
          %s192 = smul.u32 2, %s20
          %p193 = scmp.lt.s32.totalorder %s192, 1
          %s194 = scalar_select %p193, %s192, 1
          %s195 = smul.addr %s194, 2
          %s196 = smul.addr %s195, 4
          %s197 = scalar_lea.vmem %s0, %s196
          %s198 = smul.u32 2, %s20
        $region16: #{feed_forward.1} parent=11 // pred_fallthru
          _
        // Predicated region
        $region17: #{feed_forward.1} parent=11 // pred_check
          %p199 = pneg %p148
        $region18: #{feed_forward.1} parent=11 // pred_check_branch
          %201 = sbr.rel (%p199) target = $region20
        $region19: #{feed_forward.1} parent=11 // pred_region
          _
        $region20: #{feed_forward.1} parent=11 // pred_fallthru
          _
      $region12: #{feed_forward.1} parent=5 // pred_fallthru
        _
      %p202 = scmp.lt.s32.totalorder %s11, 5
      // Predicated region
      $region21: #{feed_forward.1} parent=5 // pred_check
        %p203 = pneg %p202
      $region22: #{feed_forward.1} parent=5 // pred_check_branch
        %205 = sbr.rel (%p203) target = $region24
      $region23: #{feed_forward.1} parent=5 // pred_region
        // Predicated region
        $region25: #{feed_forward.1} parent=23 // pred_check
          %p206 = pneg %p69
        $region26: #{feed_forward.1} parent=23 // pred_check_branch
          %208 = sbr.rel (%p206) target = $region28
        $region27: #{feed_forward.1} parent=23 // pred_region
          %s209 = sand.u32 %s59, 1
          %s210 = sand.u32 %s59, 1
          %s211 = smul.addr %s210, 128
          %s212 = scalar_lea.vmem [#allocation3], %s211
          %s213 = smul.addr %s19, 4
          %s214 = scalar_lea.vmem %s1, %s213
          // Predicated region
          $region29: #{feed_forward.1} parent=27 // pred_check
            _
          $region30: #{feed_forward.1} parent=27 // pred_check_branch
            %216 = sbr.rel (0) target = $region32
          $region31: #{feed_forward.1} parent=27 // pred_region
            // Predicated region
            $region33: #{feed_forward.1} parent=31 // pred_check
              _
            $region34: #{feed_forward.1} parent=31 // pred_check_branch
              %218 = sbr.rel target = $region36
            $region35: #{feed_forward.1} parent=31 // pred_region
              // Predicated region
              $region48: #{feed_forward.1} parent=35 // pred_check
                _
              $region49: #{feed_forward.1} parent=35 // pred_check_branch
                %295 = sbr.rel (0) target = $region51
              $region50: #{feed_forward.1} parent=35 // pred_region
                loop: start=0, step=1, limit=1
                $region52: #{feed_forward.1} parent=50 // loop_pre_header
                  _
                $region53: #{feed_forward.1} parent=50 // loop_header
                  %s297 = sphi 0, %s301
                  %p298 = scmp.ge.s32.totalorder %s297, 1
                  %s302 = sphi %s214, %s214
                  %s303 = sphi %s212, %s212
                $region54: #{feed_forward.1} parent=50 // loop_header_branch
                  %300 = sbr.rel (%p298) target = $region58
                $region55: #{feed_forward.1} parent=50 // loop_body
                  _
                $region56: #{feed_forward.1} parent=50 // loop_footer
                  %s301 = sadd.s32 1, %s297
                $region57: #{feed_forward.1} parent=50 // loop_footer_branch
                  %296 = sbr.rel target = $region53
                $region58: #{feed_forward.1} parent=50 // loop_exit
                  _
                loop: start=0, step=1, limit=1
                $region59: #{feed_forward.1} parent=50 // loop_pre_header
                  _
                $region60: #{feed_forward.1} parent=50 // loop_header
                  %s306 = sphi 0, %s310
                  %p307 = scmp.ge.s32.totalorder %s306, 1
                  %s311 = sphi %s214, %s214
                  %s312 = sphi %s212, %s212
                $region61: #{feed_forward.1} parent=50 // loop_header_branch
                  %309 = sbr.rel (%p307) target = $region65
                $region62: #{feed_forward.1} parent=50 // loop_body
                  %v313 = vld [vmem:[%s311] sm:$0xf]
                  %314 = vst [vmem:[%s312] sm:$0xf] %v313
                  %v315 = vld [vmem:[%s311 + $0x14] sm:$0xf]
                  %316 = vst [vmem:[%s312 + $0x4] sm:$0xf] %v315
                  %v317 = vld [vmem:[%s311 + $0x28] sm:$0xf]
                  %318 = vst [vmem:[%s312 + $0x8] sm:$0xf] %v317
                  %v319 = vld [vmem:[%s311 + $0x3c] sm:$0xf]
                  %320 = vst [vmem:[%s312 + $0xc] sm:$0xf] %v319
                  %v321 = vld [vmem:[%s311 + $0x50] sm:$0xf]
                  %322 = vst [vmem:[%s312 + $0x10] sm:$0xf] %v321
                  %v323 = vld [vmem:[%s311 + $0x64] sm:$0xf]
                  %324 = vst [vmem:[%s312 + $0x14] sm:$0xf] %v323
                  %v325 = vld [vmem:[%s311 + $0x78] sm:$0xf]
                  %326 = vst [vmem:[%s312 + $0x18] sm:$0xf] %v325
                  %v327 = vld [vmem:[%s311 + $0x8c] sm:$0xf]
                  %328 = vst [vmem:[%s312 + $0x1c] sm:$0xf] %v327
                  %v329 = vld [vmem:[%s311 + $0xa0] sm:$0xf]
                  %330 = vst [vmem:[%s312 + $0x20] sm:$0xf] %v329
                  %v331 = vld [vmem:[%s311 + $0xb4] sm:$0xf]
                  %332 = vst [vmem:[%s312 + $0x24] sm:$0xf] %v331
                  %v333 = vld [vmem:[%s311 + $0xc8] sm:$0xf]
                  %334 = vst [vmem:[%s312 + $0x28] sm:$0xf] %v333
                  %v335 = vld [vmem:[%s311 + $0xdc] sm:$0xf]
                  %336 = vst [vmem:[%s312 + $0x2c] sm:$0xf] %v335
                  %v337 = vld [vmem:[%s311 + $0xf0] sm:$0xf]
                  %338 = vst [vmem:[%s312 + $0x30] sm:$0xf] %v337
                  %v339 = vld [vmem:[%s311 + $0x104] sm:$0xf]
                  %340 = vst [vmem:[%s312 + $0x34] sm:$0xf] %v339
                  %v341 = vld [vmem:[%s311 + $0x118] sm:$0xf]
                  %342 = vst [vmem:[%s312 + $0x38] sm:$0xf] %v341
                  %v343 = vld [vmem:[%s311 + $0x12c] sm:$0xf]
                  %344 = vst [vmem:[%s312 + $0x3c] sm:$0xf] %v343
                  %v345 = vld [vmem:[%s311 + $0x140] sm:$0xf]
                  %346 = vst [vmem:[%s312 + $0x40] sm:$0xf] %v345
                  %v347 = vld [vmem:[%s311 + $0x154] sm:$0xf]
                  %348 = vst [vmem:[%s312 + $0x44] sm:$0xf] %v347
                  %v349 = vld [vmem:[%s311 + $0x168] sm:$0xf]
                  %350 = vst [vmem:[%s312 + $0x48] sm:$0xf] %v349
                  %v351 = vld [vmem:[%s311 + $0x17c] sm:$0xf]
                  %352 = vst [vmem:[%s312 + $0x4c] sm:$0xf] %v351
                  %v353 = vld [vmem:[%s311 + $0x190] sm:$0xf]
                  %354 = vst [vmem:[%s312 + $0x50] sm:$0xf] %v353
                  %v355 = vld [vmem:[%s311 + $0x1a4] sm:$0xf]
                  %356 = vst [vmem:[%s312 + $0x54] sm:$0xf] %v355
                  %v357 = vld [vmem:[%s311 + $0x1b8] sm:$0xf]
                  %358 = vst [vmem:[%s312 + $0x58] sm:$0xf] %v357
                  %v359 = vld [vmem:[%s311 + $0x1cc] sm:$0xf]
                  %360 = vst [vmem:[%s312 + $0x5c] sm:$0xf] %v359
                  %v361 = vld [vmem:[%s311 + $0x1e0] sm:$0xf]
                  %362 = vst [vmem:[%s312 + $0x60] sm:$0xf] %v361
                  %v363 = vld [vmem:[%s311 + $0x1f4] sm:$0xf]
                  %364 = vst [vmem:[%s312 + $0x64] sm:$0xf] %v363
                  %v365 = vld [vmem:[%s311 + $0x208] sm:$0xf]
                  %366 = vst [vmem:[%s312 + $0x68] sm:$0xf] %v365
                  %v367 = vld [vmem:[%s311 + $0x21c] sm:$0xf]
                  %368 = vst [vmem:[%s312 + $0x6c] sm:$0xf] %v367
                  %v369 = vld [vmem:[%s311 + $0x230] sm:$0xf]
                  %370 = vst [vmem:[%s312 + $0x70] sm:$0xf] %v369
                  %v371 = vld [vmem:[%s311 + $0x244] sm:$0xf]
                  %372 = vst [vmem:[%s312 + $0x74] sm:$0xf] %v371
                  %v373 = vld [vmem:[%s311 + $0x258] sm:$0xf]
                  %374 = vst [vmem:[%s312 + $0x78] sm:$0xf] %v373
                  %v375 = vld [vmem:[%s311 + $0x26c] sm:$0xf]
                  %376 = vst [vmem:[%s312 + $0x7c] sm:$0xf] %v375
                $region63: #{feed_forward.1} parent=50 // loop_footer
                  %s310 = sadd.s32 1, %s306
                $region64: #{feed_forward.1} parent=50 // loop_footer_branch
                  %305 = sbr.rel target = $region60
                $region65: #{feed_forward.1} parent=50 // loop_exit
                  _
              $region51: #{feed_forward.1} parent=35 // pred_fallthru
                _
            $region36: #{feed_forward.1} parent=31 // pred_fallthru
              _
            // Predicated region
            $region37: #{feed_forward.1} parent=31 // pred_check
              _
            $region38: #{feed_forward.1} parent=31 // pred_check_branch
              %220 = sbr.rel (0) target = $region40
            $region39: #{feed_forward.1} parent=31 // pred_region
              loop: start=0, step=1, limit=1
              $region41: #{feed_forward.1} parent=39 // loop_pre_header
                _
              $region42: #{feed_forward.1} parent=39 // loop_header
                %s223 = sphi 0, %s227
                %p224 = scmp.ge.s32.totalorder %s223, 1
                %s228 = sphi %s214, %s214
                %s229 = sphi %s212, %s212
              $region43: #{feed_forward.1} parent=39 // loop_header_branch
                %226 = sbr.rel (%p224) target = $region47
              $region44: #{feed_forward.1} parent=39 // loop_body
                %v230 = vld [vmem:[%s228] sm:$0xf]
                %231 = vst [vmem:[%s229] sm:$0xf] %v230
                %v232 = vld [vmem:[%s228 + $0x14] sm:$0xf]
                %233 = vst [vmem:[%s229 + $0x4] sm:$0xf] %v232
                %v234 = vld [vmem:[%s228 + $0x28] sm:$0xf]
                %235 = vst [vmem:[%s229 + $0x8] sm:$0xf] %v234
                %v236 = vld [vmem:[%s228 + $0x3c] sm:$0xf]
                %237 = vst [vmem:[%s229 + $0xc] sm:$0xf] %v236
                %v238 = vld [vmem:[%s228 + $0x50] sm:$0xf]
                %239 = vst [vmem:[%s229 + $0x10] sm:$0xf] %v238
                %v240 = vld [vmem:[%s228 + $0x64] sm:$0xf]
                %241 = vst [vmem:[%s229 + $0x14] sm:$0xf] %v240
                %v242 = vld [vmem:[%s228 + $0x78] sm:$0xf]
                %243 = vst [vmem:[%s229 + $0x18] sm:$0xf] %v242
                %v244 = vld [vmem:[%s228 + $0x8c] sm:$0xf]
                %245 = vst [vmem:[%s229 + $0x1c] sm:$0xf] %v244
                %v246 = vld [vmem:[%s228 + $0xa0] sm:$0xf]
                %247 = vst [vmem:[%s229 + $0x20] sm:$0xf] %v246
                %v248 = vld [vmem:[%s228 + $0xb4] sm:$0xf]
                %249 = vst [vmem:[%s229 + $0x24] sm:$0xf] %v248
                %v250 = vld [vmem:[%s228 + $0xc8] sm:$0xf]
                %251 = vst [vmem:[%s229 + $0x28] sm:$0xf] %v250
                %v252 = vld [vmem:[%s228 + $0xdc] sm:$0xf]
                %253 = vst [vmem:[%s229 + $0x2c] sm:$0xf] %v252
                %v254 = vld [vmem:[%s228 + $0xf0] sm:$0xf]
                %255 = vst [vmem:[%s229 + $0x30] sm:$0xf] %v254
                %v256 = vld [vmem:[%s228 + $0x104] sm:$0xf]
                %257 = vst [vmem:[%s229 + $0x34] sm:$0xf] %v256
                %v258 = vld [vmem:[%s228 + $0x118] sm:$0xf]
                %259 = vst [vmem:[%s229 + $0x38] sm:$0xf] %v258
                %v260 = vld [vmem:[%s228 + $0x12c] sm:$0xf]
                %261 = vst [vmem:[%s229 + $0x3c] sm:$0xf] %v260
                %v262 = vld [vmem:[%s228 + $0x140] sm:$0xf]
                %263 = vst [vmem:[%s229 + $0x40] sm:$0xf] %v262
                %v264 = vld [vmem:[%s228 + $0x154] sm:$0xf]
                %265 = vst [vmem:[%s229 + $0x44] sm:$0xf] %v264
                %v266 = vld [vmem:[%s228 + $0x168] sm:$0xf]
                %267 = vst [vmem:[%s229 + $0x48] sm:$0xf] %v266
                %v268 = vld [vmem:[%s228 + $0x17c] sm:$0xf]
                %269 = vst [vmem:[%s229 + $0x4c] sm:$0xf] %v268
                %v270 = vld [vmem:[%s228 + $0x190] sm:$0xf]
                %271 = vst [vmem:[%s229 + $0x50] sm:$0xf] %v270
                %v272 = vld [vmem:[%s228 + $0x1a4] sm:$0xf]
                %273 = vst [vmem:[%s229 + $0x54] sm:$0xf] %v272
                %v274 = vld [vmem:[%s228 + $0x1b8] sm:$0xf]
                %275 = vst [vmem:[%s229 + $0x58] sm:$0xf] %v274
                %v276 = vld [vmem:[%s228 + $0x1cc] sm:$0xf]
                %277 = vst [vmem:[%s229 + $0x5c] sm:$0xf] %v276
                %v278 = vld [vmem:[%s228 + $0x1e0] sm:$0xf]
                %279 = vst [vmem:[%s229 + $0x60] sm:$0xf] %v278
                %v280 = vld [vmem:[%s228 + $0x1f4] sm:$0xf]
                %281 = vst [vmem:[%s229 + $0x64] sm:$0xf] %v280
                %v282 = vld [vmem:[%s228 + $0x208] sm:$0xf]
                %283 = vst [vmem:[%s229 + $0x68] sm:$0xf] %v282
                %v284 = vld [vmem:[%s228 + $0x21c] sm:$0xf]
                %285 = vst [vmem:[%s229 + $0x6c] sm:$0xf] %v284
                %v286 = vld [vmem:[%s228 + $0x230] sm:$0xf]
                %287 = vst [vmem:[%s229 + $0x70] sm:$0xf] %v286
                %v288 = vld [vmem:[%s228 + $0x244] sm:$0xf]
                %289 = vst [vmem:[%s229 + $0x74] sm:$0xf] %v288
                %v290 = vld [vmem:[%s228 + $0x258] sm:$0xf]
                %291 = vst [vmem:[%s229 + $0x78] sm:$0xf] %v290
                %v292 = vld [vmem:[%s228 + $0x26c] sm:$0xf]
                %293 = vst [vmem:[%s229 + $0x7c] sm:$0xf] %v292
              $region45: #{feed_forward.1} parent=39 // loop_footer
                %s227 = sadd.s32 1, %s223
              $region46: #{feed_forward.1} parent=39 // loop_footer_branch
                %222 = sbr.rel target = $region42
              $region47: #{feed_forward.1} parent=39 // loop_exit
                _
            $region40: #{feed_forward.1} parent=31 // pred_fallthru
              _
          $region32: #{feed_forward.1} parent=27 // pred_fallthru
            _
          %377 = vnop
        $region28: #{feed_forward.1} parent=23 // pred_fallthru
          _
        // Predicated region
        $region66: #{feed_forward.1} parent=23 // pred_check
          %p378 = pneg %p95
        $region67: #{feed_forward.1} parent=23 // pred_check_branch
          %380 = sbr.rel (%p378) target = $region69
        $region68: #{feed_forward.1} parent=23 // pred_region
          %p381 = scmp.lt.s32.totalorder %s19, 4
          %s382 = scalar_select %p381, %s19, 4
          %s383 = scalar_lea.vmem %s2, %s382
        $region69: #{feed_forward.1} parent=23 // pred_fallthru
          _
        // Predicated region
        $region70: #{feed_forward.1} parent=23 // pred_check
          %p384 = pneg %p121
        $region71: #{feed_forward.1} parent=23 // pred_check_branch
          %386 = sbr.rel (%p384) target = $region73
        $region72: #{feed_forward.1} parent=23 // pred_region
          %s387 = smul.u32 16, %s19
          %p388 = scmp.lt.s32.totalorder %s387, 79
          %s389 = scalar_select %p388, %s387, 79
          %s390 = smul.addr %s389, 2
          %s391 = smul.addr %s390, 4
          %s392 = scalar_lea.vmem %s3, %s391
          %s393 = smul.u32 16, %s19
        $region73: #{feed_forward.1} parent=23 // pred_fallthru
          _
      $region24: #{feed_forward.1} parent=5 // pred_fallthru
        _
      %p394 = scmp.le.s32.totalorder 1, %s11
      %p395 = scmp.lt.s32.totalorder %s11, 6
      %p396 = pnand %p394, %p395
      %p397 = pneg %p396
      // Predicated region
      $region74: #{feed_forward.1} parent=5 // pred_check
        _
      $region75: #{feed_forward.1} parent=5 // pred_check_branch
        %399 = sbr.rel (%p396) target = $region77
      $region76: #{feed_forward.1} parent=5 // pred_region
        %s400 = ssub.s32 %s11, 1
        %s401 = sand.u32 %s62, 1
        %s402 = sand.u32 %s62, 1
        %s403 = smul.addr %s402, 128
        %s404 = scalar_lea.vmem [#allocation3], %s403
        // Predicated region
        $region78: #{feed_forward.1} parent=76 // pred_check
          %p405 = pneg %p75
        $region79: #{feed_forward.1} parent=76 // pred_check_branch
          %407 = sbr.rel (%p405) target = $region81
        $region80: #{feed_forward.1} parent=76 // pred_region
          _
        $region81: #{feed_forward.1} parent=76 // pred_fallthru
          _
        %s408 = smul.u32 2, %s20
        %p409 = scmp.lt.s32.totalorder %s408, 1
        %s410 = scalar_select %p409, %s408, 1
        %s411 = smul.addr %s410, 2
        %s412 = smul.addr %s411, 4
        %s413 = scalar_lea.vmem %s0, %s412
        %p414 = pneg %p49
        %p415 = pneg %p46
        %s416 = sand.u32 %s62, 1
        %s417 = sand.u32 %s62, 1
        %s418 = smul.addr %s417, 128
        %s419 = scalar_lea.vmem [#allocation3], %s418
        %p420 = pneg %p75
        %p421 = pneg %p72
        %p422 = scmp.lt.s32.totalorder %s21, 4
        %s423 = scalar_select %p422, %s21, 4
        %s424 = scalar_lea.vmem %s2, %s423
        %p425 = pneg %p101
        %p426 = pneg %p98
        %s427 = smul.u32 16, %s21
        %p428 = scmp.lt.s32.totalorder %s427, 79
        %s429 = scalar_select %p428, %s427, 79
        %s430 = smul.addr %s429, 2
        %s431 = smul.addr %s430, 4
        %s432 = scalar_lea.vmem %s3, %s431
        %p433 = pneg %p127
        %p434 = pneg %p124
        %p435 = pneg %p148
        %p436 = pneg %p145
        %p437 = pneg %p174
        %p438 = pneg %p171
        %s439 = smul.u32 2, %s20
        %p440 = scmp.lt.s32.totalorder %s439, 1
        %s441 = scalar_select %p440, %s439, 1
        %s442 = smul.addr %s441, 2
        %s443 = smul.addr %s442, 8
        %s444 = scalar_lea.vmem %s5, %s443
        %s445 = smul.u32 2, %s20
        %p446 = scmp.lt.s32.totalorder %s445, 1
        %s447 = scalar_select %p446, %s445, 1
        %s448 = smul.addr %s447, 2
        %s449 = smul.addr %s448, 4
        %s450 = scalar_lea.vmem %s0, %s449
        %s451 = smul.u32 2, %s20
        %p452 = scmp.lt.s32.totalorder %s21, 4
        %s453 = scalar_select %p452, %s21, 4
        %s454 = scalar_lea.vmem %s2, %s453
        %s455 = smul.u32 16, %s21
        %p456 = scmp.lt.s32.totalorder %s455, 79
        %s457 = scalar_select %p456, %s455, 79
        %s458 = smul.addr %s457, 2
        %s459 = smul.addr %s458, 4
        %s460 = scalar_lea.vmem %s3, %s459
        %s461 = smul.u32 16, %s21
        %s462 = smul.u32 2, %s20
        %p463 = scmp.lt.s32.totalorder %s462, 1
        %s464 = scalar_select %p463, %s462, 1
        %s465 = smul.addr %s464, 2
        %s466 = smul.addr %s465, 8
        %s467 = scalar_lea.vmem %s5, %s466
        %s468 = smul.u32 2, %s20
        %p470 = scmp.eq.s32.totalorder %s21, 0
        // Predicated region
        $region82: #{feed_forward.1} parent=76 // pred_check
          %p471 = pneg %p470
        $region83: #{feed_forward.1} parent=76 // pred_check_branch
          %473 = sbr.rel (%p471) target = $region85
        $region84: #{feed_forward.1} parent=76 // pred_region
          %474 = vst [vmem:[#allocation2] sm:$0xff] 0.0
          %475 = vst [vmem:[#allocation2 + $0x8] sm:$0xff] 0.0
          %476 = vst [vmem:[#allocation2 + $0x10] sm:$0xff] 0.0
          %477 = vst [vmem:[#allocation2 + $0x18] sm:$0xff] 0.0
        $region85: #{feed_forward.1} parent=76 // pred_fallthru
          _
        %v478 = vld [vmem:[%s450] sm:$0xff]
        %v479 = vld [vmem:[%s450 + $0x8] sm:$0xff]
        %v480 = vld [vmem:[%s404] sm:$0xf]
        %v481 = vld [vmem:[%s404 + $0x4] sm:$0xf]
        %v482 = vld [vmem:[%s404 + $0x8] sm:$0xf]
        %v483 = vld [vmem:[%s404 + $0xc] sm:$0xf]
        %v484 = vld [vmem:[%s404 + $0x10] sm:$0xf]
        %v485 = vld [vmem:[%s404 + $0x14] sm:$0xf]
        %v486 = vld [vmem:[%s404 + $0x18] sm:$0xf]
        %v487 = vld [vmem:[%s404 + $0x1c] sm:$0xf]
        %v488 = vld [vmem:[%s404 + $0x20] sm:$0xf]
        %v489 = vld [vmem:[%s404 + $0x24] sm:$0xf]
        %v490 = vld [vmem:[%s404 + $0x28] sm:$0xf]
        %v491 = vld [vmem:[%s404 + $0x2c] sm:$0xf]
        %v492 = vld [vmem:[%s404 + $0x30] sm:$0xf]
        %v493 = vld [vmem:[%s404 + $0x34] sm:$0xf]
        %v494 = vld [vmem:[%s404 + $0x38] sm:$0xf]
        %v495 = vld [vmem:[%s404 + $0x3c] sm:$0xf]
        %v496 = vld [vmem:[%s404 + $0x40] sm:$0xf]
        %v497 = vld [vmem:[%s404 + $0x44] sm:$0xf]
        %v498 = vld [vmem:[%s404 + $0x48] sm:$0xf]
        %v499 = vld [vmem:[%s404 + $0x4c] sm:$0xf]
        %v500 = vld [vmem:[%s404 + $0x50] sm:$0xf]
        %v501 = vld [vmem:[%s404 + $0x54] sm:$0xf]
        %v502 = vld [vmem:[%s404 + $0x58] sm:$0xf]
        %v503 = vld [vmem:[%s404 + $0x5c] sm:$0xf]
        %v504 = vld [vmem:[%s404 + $0x60] sm:$0xf]
        %v505 = vld [vmem:[%s404 + $0x64] sm:$0xf]
        %v506 = vld [vmem:[%s404 + $0x68] sm:$0xf]
        %v507 = vld [vmem:[%s404 + $0x6c] sm:$0xf]
        %v508 = vld [vmem:[%s404 + $0x70] sm:$0xf]
        %v509 = vld [vmem:[%s404 + $0x74] sm:$0xf]
        %v510 = vld [vmem:[%s404 + $0x78] sm:$0xf]
        %v511 = vld [vmem:[%s404 + $0x7c] sm:$0xf]
        %v512 = vld [vmem:[%s454] sm:$0x1]
        %v514 = vlaneseq
        %v515 = vshrl.u32 %v514, 7
        %v516 = vsub.s32 0, %v515
        %v517 = vrot.slane %v512, %v516
        %v521 = vunpack.c.l.b16 %v478
        %v522 = vunpack.c.h.b16 %v478
        %v523 = vunpack.c.l.b16 %v479
        %v524 = vunpack.c.h.b16 %v479
        %v525 = vpack.c.b16 %v523, %v521
        %v526 = vpack.c.b16 %v524, %v522
        %v561 = vunpack.c.l.b16 %v480
        %v562 = vunpack.c.l.b16 %v481
        %v563 = vunpack.c.l.b16 %v482
        %v564 = vunpack.c.l.b16 %v483
        %v565 = vunpack.c.l.b16 %v484
        %v566 = vunpack.c.l.b16 %v485
        %v567 = vunpack.c.l.b16 %v486
        %v568 = vunpack.c.l.b16 %v487
        %v569 = vunpack.c.l.b16 %v488
        %v570 = vunpack.c.l.b16 %v489
        %v571 = vunpack.c.l.b16 %v490
        %v572 = vunpack.c.l.b16 %v491
        %v573 = vunpack.c.l.b16 %v492
        %v574 = vunpack.c.l.b16 %v493
        %v575 = vunpack.c.l.b16 %v494
        %v576 = vunpack.c.l.b16 %v495
        %v577 = vunpack.c.l.b16 %v496
        %v578 = vunpack.c.l.b16 %v497
        %v579 = vunpack.c.l.b16 %v498
        %v580 = vunpack.c.l.b16 %v499
        %v581 = vunpack.c.l.b16 %v500
        %v582 = vunpack.c.l.b16 %v501
        %v583 = vunpack.c.l.b16 %v502
        %v584 = vunpack.c.l.b16 %v503
        %v585 = vunpack.c.l.b16 %v504
        %v586 = vunpack.c.l.b16 %v505
        %v587 = vunpack.c.l.b16 %v506
        %v588 = vunpack.c.l.b16 %v507
        %v589 = vunpack.c.l.b16 %v508
        %v590 = vunpack.c.l.b16 %v509
        %v591 = vunpack.c.l.b16 %v510
        %v592 = vunpack.c.l.b16 %v511
        %v593 = vpack.c.b16 %v562, %v561
        %v594 = vpack.c.b16 %v564, %v563
        %v595 = vpack.c.b16 %v566, %v565
        %v596 = vpack.c.b16 %v568, %v567
        %v597 = vpack.c.b16 %v570, %v569
        %v598 = vpack.c.b16 %v572, %v571
        %v599 = vpack.c.b16 %v574, %v573
        %v600 = vpack.c.b16 %v576, %v575
        %v601 = vpack.c.b16 %v578, %v577
        %v602 = vpack.c.b16 %v580, %v579
        %v603 = vpack.c.b16 %v582, %v581
        %v604 = vpack.c.b16 %v584, %v583
        %v605 = vpack.c.b16 %v586, %v585
        %v606 = vpack.c.b16 %v588, %v587
        %v607 = vpack.c.b16 %v590, %v589
        %v608 = vpack.c.b16 %v592, %v591
        %625 = vmatprep.subr.bf16.mxu0 0
        %626 = vmatpush1.bf16.msra.mxu0 %v593
        %627 = vmatprep.subr.bf16.mxu0 0
        %628 = vmatpush1.bf16.msra.mxu0 %v594
        %629 = vmatprep.subr.bf16.mxu0 0
        %630 = vmatpush1.bf16.msra.mxu0 %v595
        %631 = vmatprep.subr.bf16.mxu0 0
        %632 = vmatpush1.bf16.msra.mxu0 %v596
        %633 = vmatprep.subr.bf16.mxu0 0
        %634 = vmatpush1.bf16.msra.mxu0 %v597
        %635 = vmatprep.subr.bf16.mxu0 0
        %636 = vmatpush1.bf16.msra.mxu0 %v598
        %637 = vmatprep.subr.bf16.mxu0 0
        %638 = vmatpush1.bf16.msra.mxu0 %v599
        %639 = vmatprep.subr.bf16.mxu0 0
        %640 = vmatpush1.bf16.msra.mxu0 %v600
        %641 = vmatprep.subr.bf16.mxu0 0
        %642 = vmatpush1.bf16.msra.mxu0 %v601
        %643 = vmatprep.subr.bf16.mxu0 0
        %644 = vmatpush1.bf16.msra.mxu0 %v602
        %645 = vmatprep.subr.bf16.mxu0 0
        %646 = vmatpush1.bf16.msra.mxu0 %v603
        %647 = vmatprep.subr.bf16.mxu0 0
        %648 = vmatpush1.bf16.msra.mxu0 %v604
        %649 = vmatprep.subr.bf16.mxu0 0
        %650 = vmatpush1.bf16.msra.mxu0 %v605
        %651 = vmatprep.subr.bf16.mxu0 0
        %652 = vmatpush1.bf16.msra.mxu0 %v606
        %653 = vmatprep.subr.bf16.mxu0 0
        %654 = vmatpush1.bf16.msra.mxu0 %v607
        %655 = vmatprep.subr.bf16.mxu0 0
        %656 = vmatpush1.bf16.msra.mxu0 %v608
        %657 = vmatprep.mubr.bf16.mxu0 %v526
        %658 = vmatmul.mubr.bf16.gmra.mrb[0].mxu0 %v525
        %v659 = vpop.f32.mrb[0].mxu0
        %v660 = vadd.f32 %v517, %v659
        %v661 = vpop.f32.mrb[0].mxu0
        %v662 = vpop.f32.mrb[0].mxu0
        %v663 = vadd.f32 %v517, %v662
        %v664 = vpop.f32.mrb[0].mxu0
        %665 = vdwg.mxu0
        %v666 = vmax.f32 %v660, 0.0
        %v667 = vmax.f32 %v663, 0.0
        %v668 = vld [vmem:[#allocation2] sm:$0xff]
        %v669 = vld [vmem:[#allocation2 + $0x8] sm:$0xff]
        %v670 = vld [vmem:[#allocation2 + $0x10] sm:$0xff]
        %v671 = vld [vmem:[#allocation2 + $0x18] sm:$0xff]
        %v672 = vpack.c.bf16 %v667, %v666
        %v673 = vld [vmem:[%s460] sm:$0xff]
        %v674 = vld [vmem:[%s460 + $0x8] sm:$0xff]
        %v675 = vld [vmem:[%s460 + $0x10] sm:$0xff]
        %v676 = vld [vmem:[%s460 + $0x18] sm:$0xff]
        %v677 = vld [vmem:[%s460 + $0x20] sm:$0xff]
        %v678 = vld [vmem:[%s460 + $0x28] sm:$0xff]
        %v679 = vld [vmem:[%s460 + $0x30] sm:$0xff]
        %v680 = vld [vmem:[%s460 + $0x38] sm:$0xff]
        %v681 = vld [vmem:[%s460 + $0x40] sm:$0xff]
        %v682 = vld [vmem:[%s460 + $0x48] sm:$0xff]
        %v683 = vld [vmem:[%s460 + $0x50] sm:$0xff]
        %v684 = vld [vmem:[%s460 + $0x58] sm:$0xff]
        %v685 = vld [vmem:[%s460 + $0x60] sm:$0xff]
        %v686 = vld [vmem:[%s460 + $0x68] sm:$0xff]
        %v687 = vld [vmem:[%s460 + $0x70] sm:$0xff]
        %v688 = vld [vmem:[%s460 + $0x78] sm:$0xff]
        %v705 = vunpack.c.l.b16 %v673
        %v706 = vunpack.c.h.b16 %v673
        %v707 = vunpack.c.l.b16 %v674
        %v708 = vunpack.c.h.b16 %v674
        %v709 = vunpack.c.l.b16 %v675
        %v710 = vunpack.c.h.b16 %v675
        %v711 = vunpack.c.l.b16 %v676
        %v712 = vunpack.c.h.b16 %v676
        %v713 = vunpack.c.l.b16 %v677
        %v714 = vunpack.c.h.b16 %v677
        %v715 = vunpack.c.l.b16 %v678
        %v716 = vunpack.c.h.b16 %v678
        %v717 = vunpack.c.l.b16 %v679
        %v718 = vunpack.c.h.b16 %v679
        %v719 = vunpack.c.l.b16 %v680
        %v720 = vunpack.c.h.b16 %v680
        %v721 = vunpack.c.l.b16 %v681
        %v722 = vunpack.c.h.b16 %v681
        %v723 = vunpack.c.l.b16 %v682
        %v724 = vunpack.c.h.b16 %v682
        %v725 = vunpack.c.l.b16 %v683
        %v726 = vunpack.c.h.b16 %v683
        %v727 = vunpack.c.l.b16 %v684
        %v728 = vunpack.c.h.b16 %v684
        %v729 = vunpack.c.l.b16 %v685
        %v730 = vunpack.c.h.b16 %v685
        %v731 = vunpack.c.l.b16 %v686
        %v732 = vunpack.c.h.b16 %v686
        %v733 = vunpack.c.l.b16 %v687
        %v734 = vunpack.c.h.b16 %v687
        %v735 = vunpack.c.l.b16 %v688
        %v736 = vunpack.c.h.b16 %v688
        %v737 = vpack.c.b16 %v707, %v705
        %v738 = vpack.c.b16 %v708, %v706
        %v739 = vpack.c.b16 %v711, %v709
        %v740 = vpack.c.b16 %v712, %v710
        %v741 = vpack.c.b16 %v715, %v713
        %v742 = vpack.c.b16 %v716, %v714
        %v743 = vpack.c.b16 %v719, %v717
        %v744 = vpack.c.b16 %v720, %v718
        %v745 = vpack.c.b16 %v723, %v721
        %v746 = vpack.c.b16 %v724, %v722
        %v747 = vpack.c.b16 %v727, %v725
        %v748 = vpack.c.b16 %v728, %v726
        %v749 = vpack.c.b16 %v731, %v729
        %v750 = vpack.c.b16 %v732, %v730
        %v751 = vpack.c.b16 %v735, %v733
        %v752 = vpack.c.b16 %v736, %v734
        %769 = vmatprep.subr.bf16.mxu0 %v738
        %770 = vmatpush1.bf16.msra.mxu0 %v737
        %771 = vmatprep.subr.bf16.mxu0 %v740
        %772 = vmatpush1.bf16.msra.mxu0 %v739
        %773 = vmatprep.subr.bf16.mxu0 %v742
        %774 = vmatpush1.bf16.msra.mxu0 %v741
        %775 = vmatprep.subr.bf16.mxu0 %v744
        %776 = vmatpush1.bf16.msra.mxu0 %v743
        %777 = vmatprep.subr.bf16.mxu0 %v746
        %778 = vmatpush1.bf16.msra.mxu0 %v745
        %779 = vmatprep.subr.bf16.mxu0 %v748
        %780 = vmatpush1.bf16.msra.mxu0 %v747
        %781 = vmatprep.subr.bf16.mxu0 %v750
        %782 = vmatpush1.bf16.msra.mxu0 %v749
        %783 = vmatprep.subr.bf16.mxu0 %v752
        %784 = vmatpush1.bf16.msra.mxu0 %v751
        %785 = vmatprep.subr.bf16.mxu0 0
        %786 = vmatpush1.bf16.msra.mxu0 0
        %787 = vmatprep.subr.bf16.mxu0 0
        %788 = vmatpush1.bf16.msra.mxu0 0
        %789 = vmatprep.subr.bf16.mxu0 0
        %790 = vmatpush1.bf16.msra.mxu0 0
        %791 = vmatprep.subr.bf16.mxu0 0
        %792 = vmatpush1.bf16.msra.mxu0 0
        %793 = vmatprep.subr.bf16.mxu0 0
        %794 = vmatpush1.bf16.msra.mxu0 0
        %795 = vmatprep.subr.bf16.mxu0 0
        %796 = vmatpush1.bf16.msra.mxu0 0
        %797 = vmatprep.subr.bf16.mxu0 0
        %798 = vmatpush1.bf16.msra.mxu0 0
        %799 = vmatprep.subr.bf16.mxu0 0
        %800 = vmatpush1.bf16.msra.mxu0 0
        %801 = vmatprep.mubr.bf16.mxu0 0
        %802 = vmatmul.mubr.bf16.gmra.mrb[0].mxu0 %v672
        %v803 = vpop.f32.mrb[0].mxu0
        %v804 = vadd.f32 0.0, %v803
        %v805 = vpop.f32.mrb[0].mxu0
        %v806 = vadd.f32 0.0, %v805
        %v807 = vpop.f32.mrb[0].mxu0
        %v808 = vadd.f32 0.0, %v807
        %v809 = vpop.f32.mrb[0].mxu0
        %v810 = vadd.f32 0.0, %v809
        %811 = vdwg.mxu0
        %v812 = vadd.f32 %v668, %v804
        %v813 = vadd.f32 %v669, %v806
        %v814 = vadd.f32 %v670, %v808
        %v815 = vadd.f32 %v671, %v810
        %816 = vst [vmem:[#allocation2] sm:$0xff] %v812
        %817 = vst [vmem:[#allocation2 + $0x8] sm:$0xff] %v813
        %818 = vst [vmem:[#allocation2 + $0x10] sm:$0xff] %v814
        %819 = vst [vmem:[#allocation2 + $0x18] sm:$0xff] %v815
        %p820 = scmp.eq.s32.totalorder %s21, 4
        // Predicated region
        $region86: #{feed_forward.1} parent=76 // pred_check
          %p821 = pneg %p820
        $region87: #{feed_forward.1} parent=76 // pred_check_branch
          %823 = sbr.rel (%p821) target = $region89
        $region88: #{feed_forward.1} parent=76 // pred_region
          %v824 = vld [vmem:[#allocation2] sm:$0xff]
          %v825 = vld [vmem:[#allocation2 + $0x8] sm:$0xff]
          %v826 = vld [vmem:[#allocation2 + $0x10] sm:$0xff]
          %v827 = vld [vmem:[#allocation2 + $0x18] sm:$0xff]
          %v828 = vld [vmem:[%s4] sm:$0x3]
          %v830 = vlaneseq
          %v831 = vshrl.u32 %v830, 7
          %v832 = vsub.s32 0, %v831
          %v833 = vrot.slane %v828, %v832
          %v834 = vlaneseq
          %v835 = vshrl.u32 %v834, 7
          %v836 = vsub.s32 1, %v835
          %v837 = vrot.slane %v828, %v836
          %v840 = vadd.f32 %v824, %v833
          %v841 = vadd.f32 %v825, %v837
          %v842 = vadd.f32 %v826, %v833
          %v843 = vadd.f32 %v827, %v837
          %844 = vst [vmem:[%s467] sm:$0xff] %v840
          %845 = vst [vmem:[%s467 + $0x8] sm:$0xff] %v841
          %846 = vst [vmem:[%s467 + $0x10] sm:$0xff] %v842
          %847 = vst [vmem:[%s467 + $0x18] sm:$0xff] %v843
        $region89: #{feed_forward.1} parent=76 // pred_fallthru
          _
        %s848 = smul.u32 2, %s20
        %p849 = scmp.lt.s32.totalorder %s848, 1
        %s850 = scalar_select %p849, %s848, 1
        %s851 = smul.addr %s850, 2
        %s852 = smul.addr %s851, 8
        %s853 = scalar_lea.vmem %s5, %s852
        // Predicated region
        $region90: #{feed_forward.1} parent=76 // pred_check
          %p854 = pneg %p171
        $region91: #{feed_forward.1} parent=76 // pred_check_branch
          %856 = sbr.rel (%p854) target = $region93
        $region92: #{feed_forward.1} parent=76 // pred_region
          %s857 = smul.u32 2, %s20
        $region93: #{feed_forward.1} parent=76 // pred_fallthru
          _
        // Predicated region
        $region94: #{feed_forward.1} parent=76 // pred_check
          %p858 = pneg %p171
        $region95: #{feed_forward.1} parent=76 // pred_check_branch
          %860 = sbr.rel (%p858) target = $region97
        $region96: #{feed_forward.1} parent=76 // pred_region
          %s861 = smul.u32 2, %s20
          %p862 = scmp.lt.s32.totalorder %s861, 1
          %s863 = scalar_select %p862, %s861, 1
          %s864 = smul.addr %s863, 2
          %s865 = smul.addr %s864, 8
          %s866 = scalar_lea.vmem %s5, %s865
        $region97: #{feed_forward.1} parent=76 // pred_fallthru
          _
      $region77: #{feed_forward.1} parent=5 // pred_fallthru
        _
      %p867 = scmp.le.s32.totalorder 2, %s11
      // Predicated region
      $region98: #{feed_forward.1} parent=5 // pred_check
        %p868 = pneg %p867
      $region99: #{feed_forward.1} parent=5 // pred_check_branch
        %870 = sbr.rel (%p868) target = $region101
      $region100: #{feed_forward.1} parent=5 // pred_region
        %s871 = ssub.s32 %s11, 2
      $region101: #{feed_forward.1} parent=5 // pred_fallthru
        _
    $region6: #{feed_forward.1} parent=1 // loop_footer
      %s15 = sadd.s32 1, %s11
    $region7: #{feed_forward.1} parent=1 // loop_footer_branch
      %10 = sbr.rel target = $region3
    $region8: #{feed_forward.1} parent=1 // loop_exit
      _

</llo_original>
